<compile_context>
chip_gen: v7x
topology: tpu7x:2x2x1
jax: 0.10.0
libtpu: 0.0.40
codegen_flags: <defaults>
</compile_context>

<pallas_src>
import functools

import jax
import jax.numpy as jnp
from jax.experimental import pallas as pl
from jax.experimental.pallas import tpu as pltpu


def _round_up(a, b):
    return (a + b - 1) // b * b


def _cdiv(a, b):
    return (a + b - 1) // b


@functools.lru_cache(maxsize=1)
def _is_v5e():
    try:
        kind = jax.devices()[0].device_kind.lower()
        return ("v5e" in kind) or ("v5 lite" in kind) or ("v5lite" in kind)
    except Exception:
        return False


# ----------------------------------------------------------------------------
# Pallas kernels
# ----------------------------------------------------------------------------
def _gemm_bn_act_kernel(x_ref, w_ref, scale_ref, bias_ref, o_ref, *, relu6):
    """One (tm, tn) tile of act((x @ w) * scale + bias).

    MobileNetV2's contractions are small (K <= 960), so the whole K dim fits in
    one VMEM block: no K grid axis, no f32 accumulator scratch, no pl.when
    init/finalize.
    """
    acc = jnp.dot(x_ref[...], w_ref[...], preferred_element_type=jnp.float32)
    y = acc * scale_ref[...] + bias_ref[...]
    if relu6:
        y = jnp.clip(y, 0.0, 6.0)
    o_ref[...] = y.astype(o_ref.dtype)


def _gemm_bn_res_kernel(x_ref, w_ref, scale_ref, bias_ref, res_ref, o_ref):
    """Linear-bottleneck projection with the residual add fused in the epilogue."""
    acc = jnp.dot(x_ref[...], w_ref[...], preferred_element_type=jnp.float32)
    y = acc * scale_ref[...] + bias_ref[...]
    y = y + res_ref[...].astype(jnp.float32)
    o_ref[...] = y.astype(o_ref.dtype)


def _dw_s1_kernel(xp_ref, w_ref, scale_ref, bias_ref, o_ref):
    """Depthwise 3x3, stride 1.  xp_ref:(1,H+2,W+2,tc) halo tile; o_ref:(1,H,W,tc)."""
    H, W = o_ref.shape[1], o_ref.shape[2]
    xp = xp_ref[0].astype(jnp.float32)          # single bf16->f32 cast (hoisted)
    w = w_ref[...].astype(jnp.float32)          # (9, 1, tc)
    acc = xp[0:H, 0:W, :] * w[0]
    for dh in range(3):
        for dw in range(3):
            if dh == 0 and dw == 0:
                continue
            # TODO(synk): the dw in {1,2} offsets are sublane-misaligned slices
            # (relayout copies); pltpu.roll along W would move them to the idle
            # XLU slot, but rotation on tiny/odd W extents is not guaranteed to
            # lower, so plain slices are kept for robustness.
            acc = acc + xp[dh:dh + H, dw:dw + W, :] * w[dh * 3 + dw]
    y = acc * scale_ref[...].astype(jnp.float32) + bias_ref[...].astype(jnp.float32)
    o_ref[0] = jnp.clip(y, 0.0, 6.0).astype(o_ref.dtype)


def _dw_s2_kernel(p00_ref, p01_ref, p10_ref, p11_ref, w_ref, scale_ref,
                  bias_ref, o_ref):
    """Depthwise 3x3, stride 2 via 4 even/odd phases, each (1,Ho+1,Wo+1,tc)."""
    Ho, Wo = o_ref.shape[1], o_ref.shape[2]
    # One bf16->f32 cast per phase (4 total instead of 9 per-tap casts).
    ph = ((p00_ref[0].astype(jnp.float32), p01_ref[0].astype(jnp.float32)),
          (p10_ref[0].astype(jnp.float32), p11_ref[0].astype(jnp.float32)))
    w = w_ref[...].astype(jnp.float32)
    acc = ph[0][0][0:Ho, 0:Wo, :] * w[0]
    for dh in range(3):
        for dw in range(3):
            if dh == 0 and dw == 0:
                continue
            tap = ph[dh % 2][dw % 2][dh // 2:dh // 2 + Ho,
                                     dw // 2:dw // 2 + Wo, :]
            acc = acc + tap * w[dh * 3 + dw]
    y = acc * scale_ref[...].astype(jnp.float32) + bias_ref[...].astype(jnp.float32)
    o_ref[0] = jnp.clip(y, 0.0, 6.0).astype(o_ref.dtype)


# ----------------------------------------------------------------------------
# GEMM wrapper (bf16 MXU, fused BN/ReLU6/residual epilogue)
# ----------------------------------------------------------------------------
def _pick_tiles(M, K, N):
    del K  # single K block always (MobileNetV2: K <= 960)
    # M tile: multiples of 16 (bf16 packs 16 rows per sublane pair); partial
    # last block allowed (no padding).  Tiny M (< 16) uses the full dim.
    if M >= 1024:
        tm = 512
    elif M >= 16:
        tm = max(16, (min(M, 512) // 16) * 16)
    else:
        tm = M
    # N tile: lane-dense 128/256 chunks where N allows; full N otherwise.
    # v6e/v7x MXUs are 256 wide -> tn=256 for the wide head; v5e gains nothing
    # from 256 and prefers the smaller out/epilogue tile (single vst slot).
    if N > 128 and N % 128 == 0:
        tn = 256 if (N % 256 == 0 and not _is_v5e()) else 128
    else:
        tn = N
    m_tiles = _cdiv(M, tm)
    n_tiles = _cdiv(N, tn)
    # Avoid single-tile grids when there is enough work: gives v7x's second
    # TensorCore a tile and the pipeline >= 2 steps.
    if m_tiles == 1 and n_tiles == 1 and M >= 32:
        tm = _round_up(_cdiv(M, 2), 16)
        m_tiles = _cdiv(M, tm)
    return tm, tn, m_tiles, n_tiles


def matmul_bn_act(x, w, scale, bias, relu6, residual=None):
    """x:(M,K) w:(K,N) scale,bias:(1,N) [residual:(M,N)] -> (M,N) bf16."""
    M, K = x.shape
    _, N = w.shape
    tm, tn, m_tiles, n_tiles = _pick_tiles(M, K, N)

    x = x.astype(jnp.bfloat16)
    w = w.astype(jnp.bfloat16)
    scale = scale.astype(jnp.float32)
    bias = bias.astype(jnp.float32)

    in_specs = [
        pl.BlockSpec((tm, K), lambda i, j: (i, 0)),
        pl.BlockSpec((K, tn), lambda i, j: (0, j)),
        pl.BlockSpec((1, tn), lambda i, j: (0, j)),
        pl.BlockSpec((1, tn), lambda i, j: (0, j)),
    ]
    args = [x, w, scale, bias]
    if residual is None:
        kernel = functools.partial(_gemm_bn_act_kernel, relu6=relu6)
    else:
        in_specs.append(pl.BlockSpec((tm, tn), lambda i, j: (i, j)))
        args.append(residual.astype(jnp.bfloat16))
        kernel = _gemm_bn_res_kernel

    return pl.pallas_call(
        kernel,
        out_shape=jax.ShapeDtypeStruct((M, N), jnp.bfloat16),
        grid=(m_tiles, n_tiles),
        in_specs=in_specs,
        out_specs=pl.BlockSpec((tm, tn), lambda i, j: (i, j)),
        compiler_params=pltpu.CompilerParams(
            dimension_semantics=("parallel", "parallel"),
            vmem_limit_bytes=32 * 1024 * 1024,
        ),
    )(*args)


# ----------------------------------------------------------------------------
# Conv wrappers
# ----------------------------------------------------------------------------
def _extract_3x3_patches(x, stride):
    """x:(N,H,W,C) -> (9, N, Ho, Wo, C), tap order (kh, kw).  Stem only."""
    N, H, W, C = x.shape
    xp = jnp.pad(x, ((0, 0), (1, 1), (1, 1), (0, 0)))
    Ho = (H - 1) // stride + 1
    Wo = (W - 1) // stride + 1
    taps = []
    for dh in range(3):
        for dw in range(3):
            taps.append(
                xp[:, dh:dh + (Ho - 1) * stride + 1:stride,
                      dw:dw + (Wo - 1) * stride + 1:stride, :])
    return jnp.stack(taps, axis=0), Ho, Wo


def conv3x3_bn_relu6(x, w, scale, bias, stride):
    """Stem 3x3 conv (pad=1) via im2col + Pallas GEMM.  w:(9*Cin, Cout)."""
    # TODO(synk): only the 3-channel stem uses this path; the 9x im2col tensor
    # could be avoided by folding the taps into the BlockSpec index_map.
    N, H, W, C = x.shape
    taps, Ho, Wo = _extract_3x3_patches(x, stride)
    p = jnp.transpose(taps, (1, 2, 3, 0, 4)).reshape(N * Ho * Wo, 9 * C)
    K = 9 * C
    Kp = _round_up(K, 32)          # pad the narrow stem contraction (27 -> 32)
    if Kp != K:
        p = jnp.pad(p, ((0, 0), (0, Kp - K)))
        w = jnp.pad(w, ((0, Kp - K), (0, 0)))
    y = matmul_bn_act(p, w, scale, bias, relu6=True)
    return y.reshape(N, Ho, Wo, -1)


def conv1x1_bn(x, w, scale, bias, relu6, residual=None):
    """Pointwise conv: flatten spatial, Pallas GEMM.  w:(Cin, Cout)."""
    N, H, W, C = x.shape
    res2d = None if residual is None else residual.reshape(N * H * W, -1)
    y = matmul_bn_act(x.reshape(N * H * W, C), w, scale, bias, relu6,
                      residual=res2d)
    return y.reshape(N, H, W, -1)


def dwconv3x3_bn_relu6(x, w, scale, bias, stride):
    """Depthwise 3x3 conv (pad=1), BN+ReLU6 fused.  x:(N,H,W,C) w:(9,1,C)."""
    N, H, W, C = x.shape
    tc = 128 if C >= 128 else C            # lane-dense channel tiles
    c_tiles = _cdiv(C, tc)
    cp = pltpu.CompilerParams(
        dimension_semantics=("parallel", "parallel"),
        vmem_limit_bytes=32 * 1024 * 1024,
    )
    xp = jnp.pad(x, ((0, 0), (1, 1), (1, 1), (0, 0)))

    if stride == 1:
        return pl.pallas_call(
            _dw_s1_kernel,
            out_shape=jax.ShapeDtypeStruct((N, H, W, C), x.dtype),
            grid=(N, c_tiles),
            in_specs=[
                pl.BlockSpec((1, H + 2, W + 2, tc), lambda n, c: (n, 0, 0, c)),
                pl.BlockSpec((9, 1, tc), lambda n, c: (0, 0, c)),
                pl.BlockSpec((1, tc), lambda n, c: (0, c)),
                pl.BlockSpec((1, tc), lambda n, c: (0, c)),
            ],
            out_specs=pl.BlockSpec((1, H, W, tc), lambda n, c: (n, 0, 0, c)),
            compiler_params=cp,
        )(xp, w, scale, bias)

    # stride == 2: even/odd phase split of the padded map (same total size as
    # the input).  The 4 phases are passed as separate inputs so no XLA stack
    # copy is materialized, and the kernel only needs unit-stride slices.
    Ho = (H - 1) // 2 + 1
    Wo = (W - 1) // 2 + 1
    eh = 2 * Ho + 2 - (H + 2)      # 0 or 1
    ew = 2 * Wo + 2 - (W + 2)
    xp = jnp.pad(xp, ((0, 0), (0, eh), (0, ew), (0, 0)))
    phases = [xp[:, a::2, b::2, :] for a in (0, 1) for b in (0, 1)]
    phase_spec = pl.BlockSpec((1, Ho + 1, Wo + 1, tc), lambda n, c: (n, 0, 0, c))
    return pl.pallas_call(
        _dw_s2_kernel,
        out_shape=jax.ShapeDtypeStruct((N, Ho, Wo, C), x.dtype),
        grid=(N, c_tiles),
        in_specs=[phase_spec, phase_spec, phase_spec, phase_spec,
                  pl.BlockSpec((9, 1, tc), lambda n, c: (0, 0, c)),
                  pl.BlockSpec((1, tc), lambda n, c: (0, c)),
                  pl.BlockSpec((1, tc), lambda n, c: (0, c))],
        out_specs=pl.BlockSpec((1, Ho, Wo, tc), lambda n, c: (n, 0, 0, c)),
        compiler_params=cp,
    )(*phases, w, scale, bias)


# ----------------------------------------------------------------------------
# MobileNetV2 features: parameter construction (deterministic random init)
# ----------------------------------------------------------------------------
# TODO(synk): pretrained torchvision weights are not loadable here; parameters
# are deterministic random init with BatchNorm pre-folded into (scale, bias).
_INVERTED_RESIDUAL_SETTING = [
    # (expand t, out channels c, repeats n, stride s)
    (1, 16, 1, 1),
    (6, 24, 2, 2),
    (6, 32, 3, 2),
    (6, 64, 4, 2),
    (6, 96, 3, 1),
    (6, 160, 3, 2),
    (6, 320, 1, 1),
]
_HOOK_INDICES = (1, 3, 6, 13, 17)


def build_mobilenet_v2_params(key):
    keys = iter(jax.random.split(key, 256))

    def bn(c):
        scale = jax.random.uniform(next(keys), (1, c), jnp.float32, 0.8, 1.2)
        bias = jax.random.normal(next(keys), (1, c), jnp.float32) * 0.05
        return scale, bias

    def conv_w(kin, kout):
        return jax.random.normal(next(keys), (kin, kout), jnp.float32) * (kin ** -0.5)

    def dw_w(c):
        return jax.random.normal(next(keys), (9, 1, c), jnp.float32) * (1.0 / 3.0)

    features = []
    # features[0]: ConvBNReLU(3 -> 32, k3, s2)
    features.append({'type': 'conv3x3', 'stride': 2,
                     'w': conv_w(9 * 3, 32), 'bn': bn(32)})
    in_ch = 32
    for t, c, n, s in _INVERTED_RESIDUAL_SETTING:
        for i in range(n):
            stride = s if i == 0 else 1
            hidden = in_ch * t
            block = {
                'type': 'inverted_residual',
                'stride': stride,
                'use_res': (stride == 1 and in_ch == c),
                'expand': None if t == 1 else (conv_w(in_ch, hidden), bn(hidden)),
                'dw': (dw_w(hidden), bn(hidden)),
                'project': (conv_w(hidden, c), bn(c)),
            }
            features.append(block)
            in_ch = c
    # features[18]: ConvBNReLU(320 -> 1280, k1)
    features.append({'type': 'conv1x1', 'w': conv_w(320, 1280), 'bn': bn(1280)})
    return features


# ----------------------------------------------------------------------------
# Forward pass (mirrors MobileNet.forward: run trunk, return hooked maps)
# ----------------------------------------------------------------------------
def mobilenet_forward(x_nchw, features):
    # NCHW f32 -> NHWC bf16 activations internally.
    x = jnp.transpose(x_nchw.astype(jnp.float32), (0, 2, 3, 1)).astype(jnp.bfloat16)
    hooked = {}
    for idx, f in enumerate(features):
        if f['type'] == 'conv3x3':
            sc, b = f['bn']
            x = conv3x3_bn_relu6(x, f['w'], sc, b, f['stride'])
        elif f['type'] == 'conv1x1':
            sc, b = f['bn']
            x = conv1x1_bn(x, f['w'], sc, b, relu6=True)
        else:  # inverted residual
            # TODO(synk): the small-spatial late blocks (features 7-17) could be
            # fused (expand -> dw -> project + residual) into one pallas_call
            # with the hidden map held in VMEM to amortize launch overhead.
            inp = x
            h = x
            if f['expand'] is not None:
                w, (sc, b) = f['expand']
                h = conv1x1_bn(h, w, sc, b, relu6=True)
            w, (sc, b) = f['dw']
            h = dwconv3x3_bn_relu6(h, w, sc, b, f['stride'])
            w, (sc, b) = f['project']
            # Linear bottleneck; residual add fused into the GEMM epilogue.
            h = conv1x1_bn(h, w, sc, b, relu6=False,
                           residual=inp if f['use_res'] else None)
            x = h
        if idx in _HOOK_INDICES:
            hooked[idx] = x
    # Return the 5 hooked feature maps, converted back to NCHW f32 like PyTorch.
    return tuple(jnp.transpose(hooked[i], (0, 3, 1, 2)).astype(jnp.float32)
                 for i in _HOOK_INDICES)


# ----------------------------------------------------------------------------
if __name__ == "__main__":
    root = jax.random.PRNGKey(0)
    k_x, k_p = jax.random.split(root)

    # MobileNetV2 expects 3 input channels; small spatial size for the demo.
    x = jax.random.normal(k_x, (2, 3, 32, 32), jnp.float32)  # NCHW, like PyTorch

    features = build_mobilenet_v2_params(k_p)
    outs = mobilenet_forward(x, features)
    outs = jax.block_until_ready(outs)

    expected = [
        (2, 16, 16, 16),   # features[1]  -> mob_conv1_2
        (2, 24, 8, 8),     # features[3]  -> mob_conv2_2
        (2, 32, 4, 4),     # features[6]  -> mob_conv3_3
        (2, 96, 2, 2),     # features[13] -> mob_conv4_3
        (2, 320, 1, 1),    # features[17] -> mob_conv5_3
    ]
    assert tuple(o.shape for o in outs) == tuple(expected), \
        [o.shape for o in outs]
    assert all(bool(jnp.all(jnp.isfinite(o))) for o in outs)
    print("KERNEL_OK")
</pallas_src>

<mosaic_0001>
module attributes {stable_mosaic.version = 11 : i64} {
  func.func @_gemm_bn_act_kernel(%arg0: i32, %arg1: i32, %arg2: memref<256x32xbf16, #tpu.memory_space<vmem>>, %arg3: memref<32x32xbf16, #tpu.memory_space<vmem>>, %arg4: memref<1x32xf32, #tpu.memory_space<vmem>>, %arg5: memref<1x32xf32, #tpu.memory_space<vmem>>, %arg6: memref<256x32xbf16, #tpu.memory_space<vmem>>) attributes {dimension_semantics = [#tpu.dimension_semantics<parallel>, #tpu.dimension_semantics<parallel>], iteration_bounds = array<i64: 2, 1>, scalar_prefetch = 0 : i64, scratch_operands = 0 : i64, tpu.core_type = #tpu.core_type<tc>, window_params = [{transform_indices = @transform_0, window_bounds = array<i64: 256, 32>}, {transform_indices = @transform_1, window_bounds = array<i64: 32, 32>}, {transform_indices = @transform_2, window_bounds = array<i64: 1, 32>}, {transform_indices = @transform_3, window_bounds = array<i64: 1, 32>}, {transform_indices = @transform_4, window_bounds = array<i64: 256, 32>}]} {
    %c0 = arith.constant 0 : index
    %c0_0 = arith.constant 0 : index
    %0 = vector.load %arg2[%c0, %c0_0] : memref<256x32xbf16, #tpu.memory_space<vmem>>, vector<256x32xbf16>
    %c0_1 = arith.constant 0 : index
    %c0_2 = arith.constant 0 : index
    %1 = vector.load %arg3[%c0_1, %c0_2] : memref<32x32xbf16, #tpu.memory_space<vmem>>, vector<32x32xbf16>
    %cst = arith.constant dense<0.000000e+00> : vector<256x32xf32>
    %2 = tpu.matmul %0, %1, %cst {dimension_numbers = #tpu.dot_dimension_numbers<[1], [0], [0], [1], [0, 0, 1, 1], [], []>} : vector<256x32xbf16>, vector<32x32xbf16>, vector<256x32xf32> -> vector<256x32xf32>
    %c0_3 = arith.constant 0 : index
    %c0_4 = arith.constant 0 : index
    %3 = vector.load %arg4[%c0_3, %c0_4] : memref<1x32xf32, #tpu.memory_space<vmem>>, vector<1x32xf32>
    %4 = vector.broadcast %3 : vector<1x32xf32> to vector<256x32xf32>
    %5 = arith.mulf %2, %4 : vector<256x32xf32>
    %c0_5 = arith.constant 0 : index
    %c0_6 = arith.constant 0 : index
    %6 = vector.load %arg5[%c0_5, %c0_6] : memref<1x32xf32, #tpu.memory_space<vmem>>, vector<1x32xf32>
    %7 = vector.broadcast %6 : vector<1x32xf32> to vector<256x32xf32>
    %8 = arith.addf %5, %7 : vector<256x32xf32>
    %cst_7 = arith.constant 0.000000e+00 : f32
    %cst_8 = arith.constant 6.000000e+00 : f32
    %9 = vector.broadcast %cst_7 : f32 to vector<256x32xf32>
    %10 = arith.maximumf %9, %8 : vector<256x32xf32>
    %11 = vector.broadcast %cst_8 : f32 to vector<256x32xf32>
    %12 = arith.minimumf %11, %10 : vector<256x32xf32>
    %13 = arith.truncf %12 : vector<256x32xf32> to vector<256x32xbf16>
    %c0_9 = arith.constant 0 : index
    %c0_10 = arith.constant 0 : index
    %14 = vector.load %arg6[%c0_9, %c0_10] : memref<256x32xbf16, #tpu.memory_space<vmem>>, vector<256x32xbf16>
    tpu.vector_store %arg6[%c0_9, %c0_10], %13 {strides = array<i32>} : memref<256x32xbf16, #tpu.memory_space<vmem>>, vector<256x32xbf16>,
    return
  }
  func.func @transform_0(%arg0: i32, %arg1: i32) -> (i32, i32) {
    %c0_i32 = arith.constant 0 : i32
    %c0_i32_0 = arith.constant 0 : i32
    return %arg0, %c0_i32 : i32, i32
  }
  func.func @transform_1(%arg0: i32, %arg1: i32) -> (i32, i32) {
    %c0_i32 = arith.constant 0 : i32
    %c0_i32_0 = arith.constant 0 : i32
    return %c0_i32, %arg1 : i32, i32
  }
  func.func @transform_2(%arg0: i32, %arg1: i32) -> (i32, i32) {
    %c0_i32 = arith.constant 0 : i32
    %c0_i32_0 = arith.constant 0 : i32
    return %c0_i32, %arg1 : i32, i32
  }
  func.func @transform_3(%arg0: i32, %arg1: i32) -> (i32, i32) {
    %c0_i32 = arith.constant 0 : i32
    %c0_i32_0 = arith.constant 0 : i32
    return %c0_i32, %arg1 : i32, i32
  }
  func.func @transform_4(%arg0: i32, %arg1: i32) -> (i32, i32) {
    %c0_i32 = arith.constant 0 : i32
    return %arg0, %arg1 : i32, i32
  }
}

</mosaic_0001>

<llo_original>
// kernel: tpu_custom_call.1
$region0: #{tpu_custom_call.1}
  #allocation0 [shape = 'u32[]', space=smem, size = 0x4, offset = 0x4, fixed_abs, tag = 'smem constant byte address 0x4 - core index']
  #allocation1 [shape = 'u32[144,128]{1,0:T(1,128)}', space=vmem, size = 0x12000, scoped, tag = 'internal scratch']
  %s0 = inlined_call_operand.vmem [shape: bf16[512,32], index: 0, kind: input, shape index: {}]
  %s1 = inlined_call_operand.vmem [shape: bf16[32,32], index: 1, kind: input, shape index: {}]
  %s2 = inlined_call_operand.vmem [shape: f32[1,32], index: 2, kind: input, shape index: {}]
  %s3 = inlined_call_operand.vmem [shape: f32[1,32], index: 3, kind: input, shape index: {}]
  %s4 = inlined_call_operand.vmem [shape: bf16[512,32], index: 4, kind: output, shape index: {}]
  %s5 = sld [smem:[#allocation0]]
  $region49: #{tpu_custom_call.1} parent=0
    _
  %s7 = ssub.s32 1, %s5
  %s8 = scalar_select 0, %s7, %s5
  loop: start=0, step=1, limit=4
  $region2: #{tpu_custom_call.1} parent=0 // loop_pre_header
    _
  $region3: #{tpu_custom_call.1} parent=0 // loop_header
    %s10 = sphi 0, %s14
    %p11 = scmp.ge.s32.totalorder %s10, 4
    %s17 = sphi 0, %s29
    %s18 = sphi 0, %s25
    %s19 = sphi 0, %s17
    %s20 = sphi 0, %s18
    %s21 = sphi 0, %s19
    %s22 = sphi 0, %s20
    %s32 = sphi 0, %s34
    %s35 = sphi 0, %s32
    %s36 = sphi 0, %s35
    %s52 = sphi 0, %s36
    %s58 = sphi 0, %s60
    %s61 = sphi 0, %s58
    %s62 = sphi 0, %s61
    %s78 = sphi 0, %s62
    %s84 = sphi 0, %s86
    %s87 = sphi 0, %s84
    %s88 = sphi 0, %s87
    %s104 = sphi 0, %s88
    %s110 = sphi 0, %s112
    %s113 = sphi 0, %s110
    %s114 = sphi 0, %s113
    %s130 = sphi 0, %s114
    %s138 = sphi 0, %s140
    %s141 = sphi 0, %s138
    %s142 = sphi 0, %s141
    %s158 = sphi 0, %s142
  $region4: #{tpu_custom_call.1} parent=0 // loop_header_branch
    %13 = sbr.rel (%p11) target = $region8
  $region5: #{tpu_custom_call.1} parent=0 // loop_body
    %s15 = ssub.s32 %s10, 1
    %s16 = ssub.s32 %s10, 2
    %s23 = sadd.s32 1, %s18
    %p24 = scmp.ge.s32.totalorder %s23, 1
    %s25 = scalar_select %p24, 0, %s23
    %s26 = sadd.s32 1, %s17
    %s27 = scalar_select %p24, %s26, %s17
    %p28 = scmp.ge.s32.totalorder %s27, 2
    %s29 = scalar_select %p28, 0, %s27
    %s30 = ssub.s32 %s17, %s29
    %p31 = scmp.eq.s32.totalorder %s30, 0
    %s33 = sadd.s32 %s32, 1
    %s34 = scalar_select %p31, %s32, %s33
    %p37 = pneg %p31
    %p38 = scmp.eq.s32.totalorder %s10, 1
    %p39 = por %p37, %p38
    %p40 = scmp.ne.s32.totalorder %s32, %s35
    %p41 = scmp.eq.s32.totalorder %s10, 0
    %p42 = por %p40, %p41
    %p43 = scmp.ne.s32.totalorder %s32, %s35
    %p44 = scmp.eq.s32.totalorder %s15, 1
    %p45 = por %p43, %p44
    %p46 = scmp.ne.s32.totalorder %s35, %s36
    %p47 = scmp.eq.s32.totalorder %s15, 0
    %p48 = por %p46, %p47
    %p49 = scmp.ne.s32.totalorder %s35, %s36
    %p50 = scmp.eq.s32.totalorder %s16, 1
    %p51 = por %p49, %p50
    %p53 = scmp.ne.s32.totalorder %s36, %s52
    %p54 = scmp.eq.s32.totalorder %s16, 0
    %p55 = por %p53, %p54
    %s56 = ssub.s32 %s18, %s25
    %p57 = scmp.eq.s32.totalorder %s56, 0
    %s59 = sadd.s32 %s58, 1
    %s60 = scalar_select %p57, %s58, %s59
    %p63 = pneg %p57
    %p64 = scmp.eq.s32.totalorder %s10, 1
    %p65 = por %p63, %p64
    %p66 = scmp.ne.s32.totalorder %s58, %s61
    %p67 = scmp.eq.s32.totalorder %s10, 0
    %p68 = por %p66, %p67
    %p69 = scmp.ne.s32.totalorder %s58, %s61
    %p70 = scmp.eq.s32.totalorder %s15, 1
    %p71 = por %p69, %p70
    %p72 = scmp.ne.s32.totalorder %s61, %s62
    %p73 = scmp.eq.s32.totalorder %s15, 0
    %p74 = por %p72, %p73
    %p75 = scmp.ne.s32.totalorder %s61, %s62
    %p76 = scmp.eq.s32.totalorder %s16, 1
    %p77 = por %p75, %p76
    %p79 = scmp.ne.s32.totalorder %s62, %s78
    %p80 = scmp.eq.s32.totalorder %s16, 0
    %p81 = por %p79, %p80
    %s82 = ssub.s32 %s18, %s25
    %p83 = scmp.eq.s32.totalorder %s82, 0
    %s85 = sadd.s32 %s84, 1
    %s86 = scalar_select %p83, %s84, %s85
    %p89 = pneg %p83
    %p90 = scmp.eq.s32.totalorder %s10, 1
    %p91 = por %p89, %p90
    %p92 = scmp.ne.s32.totalorder %s84, %s87
    %p93 = scmp.eq.s32.totalorder %s10, 0
    %p94 = por %p92, %p93
    %p95 = scmp.ne.s32.totalorder %s84, %s87
    %p96 = scmp.eq.s32.totalorder %s15, 1
    %p97 = por %p95, %p96
    %p98 = scmp.ne.s32.totalorder %s87, %s88
    %p99 = scmp.eq.s32.totalorder %s15, 0
    %p100 = por %p98, %p99
    %p101 = scmp.ne.s32.totalorder %s87, %s88
    %p102 = scmp.eq.s32.totalorder %s16, 1
    %p103 = por %p101, %p102
    %p105 = scmp.ne.s32.totalorder %s88, %s104
    %p106 = scmp.eq.s32.totalorder %s16, 0
    %p107 = por %p105, %p106
    %s108 = ssub.s32 %s18, %s25
    %p109 = scmp.eq.s32.totalorder %s108, 0
    %s111 = sadd.s32 %s110, 1
    %s112 = scalar_select %p109, %s110, %s111
    %p115 = pneg %p109
    %p116 = scmp.eq.s32.totalorder %s10, 1
    %p117 = por %p115, %p116
    %p118 = scmp.ne.s32.totalorder %s110, %s113
    %p119 = scmp.eq.s32.totalorder %s10, 0
    %p120 = por %p118, %p119
    %p121 = scmp.ne.s32.totalorder %s110, %s113
    %p122 = scmp.eq.s32.totalorder %s15, 1
    %p123 = por %p121, %p122
    %p124 = scmp.ne.s32.totalorder %s113, %s114
    %p125 = scmp.eq.s32.totalorder %s15, 0
    %p126 = por %p124, %p125
    %p127 = scmp.ne.s32.totalorder %s113, %s114
    %p128 = scmp.eq.s32.totalorder %s16, 1
    %p129 = por %p127, %p128
    %p131 = scmp.ne.s32.totalorder %s114, %s130
    %p132 = scmp.eq.s32.totalorder %s16, 0
    %p133 = por %p131, %p132
    %s134 = ssub.s32 %s17, %s29
    %s135 = ssub.s32 %s18, %s25
    %s136 = sor.u32 %s134, %s135
    %p137 = scmp.eq.s32.totalorder %s136, 0
    %s139 = sadd.s32 %s138, 1
    %s140 = scalar_select %p137, %s138, %s139
    %p143 = pneg %p137
    %p144 = scmp.eq.s32.totalorder %s10, 1
    %p145 = por %p143, %p144
    %p146 = scmp.ne.s32.totalorder %s138, %s141
    %p147 = scmp.eq.s32.totalorder %s10, 0
    %p148 = por %p146, %p147
    %p149 = scmp.ne.s32.totalorder %s138, %s141
    %p150 = scmp.eq.s32.totalorder %s15, 1
    %p151 = por %p149, %p150
    %p152 = scmp.ne.s32.totalorder %s141, %s142
    %p153 = scmp.eq.s32.totalorder %s15, 0
    %p154 = por %p152, %p153
    %p155 = scmp.ne.s32.totalorder %s141, %s142
    %p156 = scmp.eq.s32.totalorder %s16, 1
    %p157 = por %p155, %p156
    %p159 = scmp.ne.s32.totalorder %s142, %s158
    %p160 = scmp.eq.s32.totalorder %s16, 0
    %p161 = por %p159, %p160
    %p162 = scmp.le.s32.totalorder 1, %s10
    %p163 = scmp.lt.s32.totalorder %s10, 3
    %p164 = pnand %p162, %p163
    %p165 = pneg %p164
    // Predicated region
    $region9: #{tpu_custom_call.1} parent=5 // pred_check
      _
    $region10: #{tpu_custom_call.1} parent=5 // pred_check_branch
      %167 = sbr.rel (%p164) target = $region12
    $region11: #{tpu_custom_call.1} parent=5 // pred_region
      %s168 = ssub.s32 %s10, 1
      // Predicated region
      $region13: #{tpu_custom_call.1} parent=11 // pred_check
        %p169 = pneg %p74
      $region14: #{tpu_custom_call.1} parent=11 // pred_check_branch
        %171 = sbr.rel (%p169) target = $region16
      $region15: #{tpu_custom_call.1} parent=11 // pred_region
        %p172 = scmp.lt.s32.totalorder %s20, 0
        %s173 = scalar_select %p172, %s20, 0
        %s174 = smul.addr %s173, 4
        %s175 = scalar_lea.vmem %s1, %s174
      $region16: #{tpu_custom_call.1} parent=11 // pred_fallthru
        _
      // Predicated region
      $region17: #{tpu_custom_call.1} parent=11 // pred_check
        %p176 = pneg %p100
      $region18: #{tpu_custom_call.1} parent=11 // pred_check_branch
        %178 = sbr.rel (%p176) target = $region20
      $region19: #{tpu_custom_call.1} parent=11 // pred_region
        %p179 = scmp.lt.s32.totalorder %s20, 0
        %s180 = scalar_select %p179, %s20, 0
        %s181 = scalar_lea.vmem %s2, %s180
      $region20: #{tpu_custom_call.1} parent=11 // pred_fallthru
        _
      // Predicated region
      $region21: #{tpu_custom_call.1} parent=11 // pred_check
        %p182 = pneg %p126
      $region22: #{tpu_custom_call.1} parent=11 // pred_check_branch
        %184 = sbr.rel (%p182) target = $region24
      $region23: #{tpu_custom_call.1} parent=11 // pred_region
        %p185 = scmp.lt.s32.totalorder %s20, 0
        %s186 = scalar_select %p185, %s20, 0
        %s187 = scalar_lea.vmem %s3, %s186
      $region24: #{tpu_custom_call.1} parent=11 // pred_fallthru
        _
    $region12: #{tpu_custom_call.1} parent=5 // pred_fallthru
      _
    %p188 = scmp.lt.s32.totalorder %s10, 2
    // Predicated region
    $region25: #{tpu_custom_call.1} parent=5 // pred_check
      %p189 = pneg %p188
    $region26: #{tpu_custom_call.1} parent=5 // pred_check_branch
      %191 = sbr.rel (%p189) target = $region28
    $region27: #{tpu_custom_call.1} parent=5 // pred_region
      // Predicated region
      $region29: #{tpu_custom_call.1} parent=27 // pred_check
        %p192 = pneg %p42
      $region30: #{tpu_custom_call.1} parent=27 // pred_check_branch
        %194 = sbr.rel (%p192) target = $region32
      $region31: #{tpu_custom_call.1} parent=27 // pred_region
        %s195 = smul.u32 32, %s17
        %p196 = scmp.lt.s32.totalorder %s195, 63
        %s197 = scalar_select %p196, %s195, 63
        %s198 = smul.addr %s197, 4
        %s199 = scalar_lea.vmem %s0, %s198
        %s200 = smul.u32 32, %s17
      $region32: #{tpu_custom_call.1} parent=27 // pred_fallthru
        _
    $region28: #{tpu_custom_call.1} parent=5 // pred_fallthru
      _
    %p201 = scmp.le.s32.totalorder 1, %s10
    %p202 = scmp.lt.s32.totalorder %s10, 3
    %p203 = pnand %p201, %p202
    %p204 = pneg %p203
    // Predicated region
    $region33: #{tpu_custom_call.1} parent=5 // pred_check
      _
    $region34: #{tpu_custom_call.1} parent=5 // pred_check_branch
      %206 = sbr.rel (%p203) target = $region36
    $region35: #{tpu_custom_call.1} parent=5 // pred_region
      %s207 = ssub.s32 %s10, 1
      %s208 = smul.u32 32, %s19
      %p209 = scmp.lt.s32.totalorder %s208, 63
      %s210 = scalar_select %p209, %s208, 63
      %s211 = smul.addr %s210, 4
      %s212 = scalar_lea.vmem %s0, %s211
      %p213 = pneg %p48
      %p214 = pneg %p45
      %p215 = scmp.lt.s32.totalorder %s20, 0
      %s216 = scalar_select %p215, %s20, 0
      %s217 = smul.addr %s216, 4
      %s218 = scalar_lea.vmem %s1, %s217
      %p219 = pneg %p74
      %p220 = pneg %p71
      %p221 = scmp.lt.s32.totalorder %s20, 0
      %s222 = scalar_select %p221, %s20, 0
      %s223 = scalar_lea.vmem %s2, %s222
      %p224 = pneg %p100
      %p225 = pneg %p97
      %p226 = scmp.lt.s32.totalorder %s20, 0
      %s227 = scalar_select %p226, %s20, 0
      %s228 = scalar_lea.vmem %s3, %s227
      %p229 = pneg %p126
      %p230 = pneg %p123
      %p231 = pneg %p154
      %p232 = pneg %p151
      %s233 = smul.u32 32, %s19
      %p234 = scmp.lt.s32.totalorder %s233, 63
      %s235 = scalar_select %p234, %s233, 63
      %p236 = scmp.lt.s32.totalorder %s20, 0
      %s237 = scalar_select %p236, %s20, 0
      %s238 = sadd.s32 %s237, %s235
      %s239 = smul.addr %s238, 4
      %s240 = scalar_lea.vmem %s4, %s239
      %s241 = smul.u32 32, %s19
      %p242 = scmp.lt.s32.totalorder %s241, 63
      %s243 = scalar_select %p242, %s241, 63
      %s244 = smul.addr %s243, 4
      %s245 = scalar_lea.vmem %s0, %s244
      %s246 = smul.u32 32, %s19
      %p247 = scmp.lt.s32.totalorder %s20, 0
      %s248 = scalar_select %p247, %s20, 0
      %s249 = smul.addr %s248, 4
      %s250 = scalar_lea.vmem %s1, %s249
      %p251 = scmp.lt.s32.totalorder %s20, 0
      %s252 = scalar_select %p251, %s20, 0
      %s253 = scalar_lea.vmem %s2, %s252
      %p254 = scmp.lt.s32.totalorder %s20, 0
      %s255 = scalar_select %p254, %s20, 0
      %s256 = scalar_lea.vmem %s3, %s255
      %s257 = smul.u32 32, %s19
      %p258 = scmp.lt.s32.totalorder %s257, 63
      %s259 = scalar_select %p258, %s257, 63
      %p260 = scmp.lt.s32.totalorder %s20, 0
      %s261 = scalar_select %p260, %s20, 0
      %s262 = sadd.s32 %s261, %s259
      %s263 = smul.addr %s262, 4
      %s264 = scalar_lea.vmem %s4, %s263
      %s265 = smul.u32 32, %s19
      %v267 = vld [vmem:[%s245] sm:$0xf]
      %v268 = vld [vmem:[%s245 + $0x4] sm:$0xf]
      %v269 = vld [vmem:[%s245 + $0x8] sm:$0xf]
      %v270 = vld [vmem:[%s245 + $0xc] sm:$0xf]
      %v271 = vld [vmem:[%s245 + $0x10] sm:$0xf]
      %v272 = vld [vmem:[%s245 + $0x14] sm:$0xf]
      %v273 = vld [vmem:[%s245 + $0x18] sm:$0xf]
      %v274 = vld [vmem:[%s245 + $0x1c] sm:$0xf]
      %v275 = vld [vmem:[%s245 + $0x20] sm:$0xf]
      %v276 = vld [vmem:[%s245 + $0x24] sm:$0xf]
      %v277 = vld [vmem:[%s245 + $0x28] sm:$0xf]
      %v278 = vld [vmem:[%s245 + $0x2c] sm:$0xf]
      %v279 = vld [vmem:[%s245 + $0x30] sm:$0xf]
      %v280 = vld [vmem:[%s245 + $0x34] sm:$0xf]
      %v281 = vld [vmem:[%s245 + $0x38] sm:$0xf]
      %v282 = vld [vmem:[%s245 + $0x3c] sm:$0xf]
      %v283 = vld [vmem:[%s245 + $0x40] sm:$0xf]
      %v284 = vld [vmem:[%s245 + $0x44] sm:$0xf]
      %v285 = vld [vmem:[%s245 + $0x48] sm:$0xf]
      %v286 = vld [vmem:[%s245 + $0x4c] sm:$0xf]
      %v287 = vld [vmem:[%s245 + $0x50] sm:$0xf]
      %v288 = vld [vmem:[%s245 + $0x54] sm:$0xf]
      %v289 = vld [vmem:[%s245 + $0x58] sm:$0xf]
      %v290 = vld [vmem:[%s245 + $0x5c] sm:$0xf]
      %v291 = vld [vmem:[%s245 + $0x60] sm:$0xf]
      %v292 = vld [vmem:[%s245 + $0x64] sm:$0xf]
      %v293 = vld [vmem:[%s245 + $0x68] sm:$0xf]
      %v294 = vld [vmem:[%s245 + $0x6c] sm:$0xf]
      %v295 = vld [vmem:[%s245 + $0x70] sm:$0xf]
      %v296 = vld [vmem:[%s245 + $0x74] sm:$0xf]
      %v297 = vld [vmem:[%s245 + $0x78] sm:$0xf]
      %v298 = vld [vmem:[%s245 + $0x7c] sm:$0xf]
      %v299 = vld [vmem:[%s250] sm:$0xf]
      %v300 = vld [vmem:[%s250 + $0x4] sm:$0xf]
      %v301 = vld [vmem:[%s250 + $0x8] sm:$0xf]
      %v302 = vld [vmem:[%s250 + $0xc] sm:$0xf]
      %v335 = vunpack.c.l.b16 %v267
      %v336 = vunpack.c.l.b16 %v268
      %v337 = vunpack.c.l.b16 %v269
      %v338 = vunpack.c.l.b16 %v270
      %v339 = vunpack.c.l.b16 %v271
      %v340 = vunpack.c.l.b16 %v272
      %v341 = vunpack.c.l.b16 %v273
      %v342 = vunpack.c.l.b16 %v274
      %v343 = vunpack.c.l.b16 %v275
      %v344 = vunpack.c.l.b16 %v276
      %v345 = vunpack.c.l.b16 %v277
      %v346 = vunpack.c.l.b16 %v278
      %v347 = vunpack.c.l.b16 %v279
      %v348 = vunpack.c.l.b16 %v280
      %v349 = vunpack.c.l.b16 %v281
      %v350 = vunpack.c.l.b16 %v282
      %v351 = vunpack.c.l.b16 %v283
      %v352 = vunpack.c.l.b16 %v284
      %v353 = vunpack.c.l.b16 %v285
      %v354 = vunpack.c.l.b16 %v286
      %v355 = vunpack.c.l.b16 %v287
      %v356 = vunpack.c.l.b16 %v288
      %v357 = vunpack.c.l.b16 %v289
      %v358 = vunpack.c.l.b16 %v290
      %v359 = vunpack.c.l.b16 %v291
      %v360 = vunpack.c.l.b16 %v292
      %v361 = vunpack.c.l.b16 %v293
      %v362 = vunpack.c.l.b16 %v294
      %v363 = vunpack.c.l.b16 %v295
      %v364 = vunpack.c.l.b16 %v296
      %v365 = vunpack.c.l.b16 %v297
      %v366 = vunpack.c.l.b16 %v298
      %v367 = vpack.c.b16 %v336, %v335
      %v368 = vpack.c.b16 %v338, %v337
      %v369 = vpack.c.b16 %v340, %v339
      %v370 = vpack.c.b16 %v342, %v341
      %v371 = vpack.c.b16 %v344, %v343
      %v372 = vpack.c.b16 %v346, %v345
      %v373 = vpack.c.b16 %v348, %v347
      %v374 = vpack.c.b16 %v350, %v349
      %v375 = vpack.c.b16 %v352, %v351
      %v376 = vpack.c.b16 %v354, %v353
      %v377 = vpack.c.b16 %v356, %v355
      %v378 = vpack.c.b16 %v358, %v357
      %v379 = vpack.c.b16 %v360, %v359
      %v380 = vpack.c.b16 %v362, %v361
      %v381 = vpack.c.b16 %v364, %v363
      %v382 = vpack.c.b16 %v366, %v365
      %v387 = vunpack.c.l.b16 %v299
      %v388 = vunpack.c.l.b16 %v300
      %v389 = vunpack.c.l.b16 %v301
      %v390 = vunpack.c.l.b16 %v302
      %v391 = vpack.c.b16 %v388, %v387
      %v392 = vpack.c.b16 %v390, %v389
      %vm395 = vcmask 261120
      %v397 = vsel %vm395, %v367, 0
      %v400 = vsel %vm395, %v368, 0
      %v403 = vsel %vm395, %v369, 0
      %v406 = vsel %vm395, %v370, 0
      %v409 = vsel %vm395, %v371, 0
      %v412 = vsel %vm395, %v372, 0
      %v415 = vsel %vm395, %v373, 0
      %v418 = vsel %vm395, %v374, 0
      %v421 = vsel %vm395, %v375, 0
      %v424 = vsel %vm395, %v376, 0
      %v427 = vsel %vm395, %v377, 0
      %v430 = vsel %vm395, %v378, 0
      %v433 = vsel %vm395, %v379, 0
      %v436 = vsel %vm395, %v380, 0
      %v439 = vsel %vm395, %v381, 0
      %v442 = vsel %vm395, %v382, 0
      %444 = vmatprep.subr.bf16.mxu0 0
      %445 = vmatpush1.bf16.msra.mxu0 %v391
      %446 = vmatprep.subr.bf16.mxu0 0
      %447 = vmatpush1.bf16.msra.mxu0 %v392
      %448 = vmatprep.subr.bf16.mxu0 0
      %449 = vmatpush1.bf16.msra.mxu0 0
      %450 = vmatprep.subr.bf16.mxu0 0
      %451 = vmatpush1.bf16.msra.mxu0 0
      %452 = vmatprep.subr.bf16.mxu0 0
      %453 = vmatpush1.bf16.msra.mxu0 0
      %454 = vmatprep.subr.bf16.mxu0 0
      %455 = vmatpush1.bf16.msra.mxu0 0
      %456 = vmatprep.subr.bf16.mxu0 0
      %457 = vmatpush1.bf16.msra.mxu0 0
      %458 = vmatprep.subr.bf16.mxu0 0
      %459 = vmatpush1.bf16.msra.mxu0 0
      %460 = vmatprep.subr.bf16.mxu0 0
      %461 = vmatpush1.bf16.msra.mxu0 0
      %462 = vmatprep.subr.bf16.mxu0 0
      %463 = vmatpush1.bf16.msra.mxu0 0
      %464 = vmatprep.subr.bf16.mxu0 0
      %465 = vmatpush1.bf16.msra.mxu0 0
      %466 = vmatprep.subr.bf16.mxu0 0
      %467 = vmatpush1.bf16.msra.mxu0 0
      %468 = vmatprep.subr.bf16.mxu0 0
      %469 = vmatpush1.bf16.msra.mxu0 0
      %470 = vmatprep.subr.bf16.mxu0 0
      %471 = vmatpush1.bf16.msra.mxu0 0
      %472 = vmatprep.subr.bf16.mxu0 0
      %473 = vmatpush1.bf16.msra.mxu0 0
      %474 = vmatprep.subr.bf16.mxu0 0
      %475 = vmatpush1.bf16.msra.mxu0 0
      %476 = vmatprep.mubr.bf16.mxu0 0
      %477 = vmatmul.mubr.bf16.gmra.mrb[0].mxu0 %v397
      %v478 = vpop.f32.mrb[0].mxu0
      %v479 = vadd.f32 0.0, %v478
      %v480 = vpop.f32.mrb[0].mxu0
      %v481 = vpop.f32.mrb[0].mxu0
      %v482 = vadd.f32 0.0, %v481
      %v483 = vpop.f32.mrb[0].mxu0
      %484 = vmatprep.mubr.bf16.mxu0 0
      %485 = vmatmul.mubr.bf16.gmra.mrb[0].mxu0 %v400
      %v486 = vpop.f32.mrb[0].mxu0
      %v487 = vadd.f32 0.0, %v486
      %v488 = vpop.f32.mrb[0].mxu0
      %v489 = vpop.f32.mrb[0].mxu0
      %v490 = vadd.f32 0.0, %v489
      %v491 = vpop.f32.mrb[0].mxu0
      %492 = vmatprep.mubr.bf16.mxu0 0
      %493 = vmatmul.mubr.bf16.gmra.mrb[0].mxu0 %v403
      %v494 = vpop.f32.mrb[0].mxu0
      %v495 = vadd.f32 0.0, %v494
      %v496 = vpop.f32.mrb[0].mxu0
      %v497 = vpop.f32.mrb[0].mxu0
      %v498 = vadd.f32 0.0, %v497
      %v499 = vpop.f32.mrb[0].mxu0
      %500 = vmatprep.mubr.bf16.mxu0 0
      %501 = vmatmul.mubr.bf16.gmra.mrb[0].mxu0 %v406
      %v502 = vpop.f32.mrb[0].mxu0
      %v503 = vadd.f32 0.0, %v502
      %v504 = vpop.f32.mrb[0].mxu0
      %v505 = vpop.f32.mrb[0].mxu0
      %v506 = vadd.f32 0.0, %v505
      %v507 = vpop.f32.mrb[0].mxu0
      %508 = vmatprep.mubr.bf16.mxu0 0
      %509 = vmatmul.mubr.bf16.gmra.mrb[0].mxu0 %v409
      %v510 = vpop.f32.mrb[0].mxu0
      %v511 = vadd.f32 0.0, %v510
      %v512 = vpop.f32.mrb[0].mxu0
      %v513 = vpop.f32.mrb[0].mxu0
      %v514 = vadd.f32 0.0, %v513
      %v515 = vpop.f32.mrb[0].mxu0
      %516 = vmatprep.mubr.bf16.mxu0 0
      %517 = vmatmul.mubr.bf16.gmra.mrb[0].mxu0 %v412
      %v518 = vpop.f32.mrb[0].mxu0
      %v519 = vadd.f32 0.0, %v518
      %v520 = vpop.f32.mrb[0].mxu0
      %v521 = vpop.f32.mrb[0].mxu0
      %v522 = vadd.f32 0.0, %v521
      %v523 = vpop.f32.mrb[0].mxu0
      %524 = vmatprep.mubr.bf16.mxu0 0
      %525 = vmatmul.mubr.bf16.gmra.mrb[0].mxu0 %v415
      %v526 = vpop.f32.mrb[0].mxu0
      %v527 = vadd.f32 0.0, %v526
      %v528 = vpop.f32.mrb[0].mxu0
      %v529 = vpop.f32.mrb[0].mxu0
      %v530 = vadd.f32 0.0, %v529
      %v531 = vpop.f32.mrb[0].mxu0
      %532 = vmatprep.mubr.bf16.mxu0 0
      %533 = vmatmul.mubr.bf16.gmra.mrb[0].mxu0 %v418
      %v534 = vpop.f32.mrb[0].mxu0
      %v535 = vadd.f32 0.0, %v534
      %v536 = vpop.f32.mrb[0].mxu0
      %v537 = vpop.f32.mrb[0].mxu0
      %v538 = vadd.f32 0.0, %v537
      %v539 = vpop.f32.mrb[0].mxu0
      %540 = vmatprep.mubr.bf16.mxu0 0
      %541 = vmatmul.mubr.bf16.gmra.mrb[0].mxu0 %v421
      %v542 = vpop.f32.mrb[0].mxu0
      %v543 = vadd.f32 0.0, %v542
      %v544 = vpop.f32.mrb[0].mxu0
      %v545 = vpop.f32.mrb[0].mxu0
      %v546 = vadd.f32 0.0, %v545
      %v547 = vpop.f32.mrb[0].mxu0
      %548 = vmatprep.mubr.bf16.mxu0 0
      %549 = vmatmul.mubr.bf16.gmra.mrb[0].mxu0 %v424
      %v550 = vpop.f32.mrb[0].mxu0
      %v551 = vadd.f32 0.0, %v550
      %v552 = vpop.f32.mrb[0].mxu0
      %v553 = vpop.f32.mrb[0].mxu0
      %v554 = vadd.f32 0.0, %v553
      %v555 = vpop.f32.mrb[0].mxu0
      %556 = vmatprep.mubr.bf16.mxu0 0
      %557 = vmatmul.mubr.bf16.gmra.mrb[0].mxu0 %v427
      %v558 = vpop.f32.mrb[0].mxu0
      %v559 = vadd.f32 0.0, %v558
      %v560 = vpop.f32.mrb[0].mxu0
      %v561 = vpop.f32.mrb[0].mxu0
      %v562 = vadd.f32 0.0, %v561
      %v563 = vpop.f32.mrb[0].mxu0
      %564 = vmatprep.mubr.bf16.mxu0 0
      %565 = vmatmul.mubr.bf16.gmra.mrb[0].mxu0 %v430
      %v566 = vpop.f32.mrb[0].mxu0
      %v567 = vadd.f32 0.0, %v566
      %v568 = vpop.f32.mrb[0].mxu0
      %v569 = vpop.f32.mrb[0].mxu0
      %v570 = vadd.f32 0.0, %v569
      %v571 = vpop.f32.mrb[0].mxu0
      %572 = vmatprep.mubr.bf16.mxu0 0
      %573 = vmatmul.mubr.bf16.gmra.mrb[0].mxu0 %v433
      %v574 = vpop.f32.mrb[0].mxu0
      %v575 = vadd.f32 0.0, %v574
      %v576 = vpop.f32.mrb[0].mxu0
      %v577 = vpop.f32.mrb[0].mxu0
      %v578 = vadd.f32 0.0, %v577
      %v579 = vpop.f32.mrb[0].mxu0
      %580 = vmatprep.mubr.bf16.mxu0 0
      %581 = vmatmul.mubr.bf16.gmra.mrb[0].mxu0 %v436
      %v582 = vpop.f32.mrb[0].mxu0
      %v583 = vadd.f32 0.0, %v582
      %v584 = vpop.f32.mrb[0].mxu0
      %v585 = vpop.f32.mrb[0].mxu0
      %v586 = vadd.f32 0.0, %v585
      %v587 = vpop.f32.mrb[0].mxu0
      %588 = vmatprep.mubr.bf16.mxu0 0
      %589 = vmatmul.mubr.bf16.gmra.mrb[0].mxu0 %v439
      %v590 = vpop.f32.mrb[0].mxu0
      %v591 = vadd.f32 0.0, %v590
      %v592 = vpop.f32.mrb[0].mxu0
      %v593 = vpop.f32.mrb[0].mxu0
      %v594 = vadd.f32 0.0, %v593
      %v595 = vpop.f32.mrb[0].mxu0
      %596 = vmatprep.mubr.bf16.mxu0 0
      %597 = vmatmul.mubr.bf16.gmra.mrb[0].mxu0 %v442
      %v598 = vpop.f32.mrb[0].mxu0
      %v599 = vadd.f32 0.0, %v598
      %v600 = vpop.f32.mrb[0].mxu0
      %v601 = vpop.f32.mrb[0].mxu0
      %v602 = vadd.f32 0.0, %v601
      %v603 = vpop.f32.mrb[0].mxu0
      %604 = vdwg.mxu0
      %v605 = vld [vmem:[%s253] sm:$0x1]
      %v607 = vlaneseq
      %v608 = vshrl.u32 %v607, 7
      %v609 = vsub.s32 0, %v608
      %v610 = vrot.slane %v605, %v609
      %v612 = vmul.f32 %v479, %v610
      %v613 = vmul.f32 %v482, %v610
      %v614 = vmul.f32 %v487, %v610
      %v615 = vmul.f32 %v490, %v610
      %v616 = vmul.f32 %v495, %v610
      %v617 = vmul.f32 %v498, %v610
      %v618 = vmul.f32 %v503, %v610
      %v619 = vmul.f32 %v506, %v610
      %v620 = vmul.f32 %v511, %v610
      %v621 = vmul.f32 %v514, %v610
      %v622 = vmul.f32 %v519, %v610
      %v623 = vmul.f32 %v522, %v610
      %v624 = vmul.f32 %v527, %v610
      %v625 = vmul.f32 %v530, %v610
      %v626 = vmul.f32 %v535, %v610
      %v627 = vmul.f32 %v538, %v610
      %v628 = vmul.f32 %v543, %v610
      %v629 = vmul.f32 %v546, %v610
      %v630 = vmul.f32 %v551, %v610
      %v631 = vmul.f32 %v554, %v610
      %v632 = vmul.f32 %v559, %v610
      %v633 = vmul.f32 %v562, %v610
      %v634 = vmul.f32 %v567, %v610
      %v635 = vmul.f32 %v570, %v610
      %v636 = vmul.f32 %v575, %v610
      %v637 = vmul.f32 %v578, %v610
      %v638 = vmul.f32 %v583, %v610
      %v639 = vmul.f32 %v586, %v610
      %v640 = vmul.f32 %v591, %v610
      %v641 = vmul.f32 %v594, %v610
      %v642 = vmul.f32 %v599, %v610
      %v643 = vmul.f32 %v602, %v610
      %v644 = vld [vmem:[%s256] sm:$0x1]
      %v646 = vlaneseq
      %v647 = vshrl.u32 %v646, 7
      %v648 = vsub.s32 0, %v647
      %v649 = vrot.slane %v644, %v648
      %v651 = vadd.f32 %v612, %v649
      %v652 = vadd.f32 %v613, %v649
      %v653 = vadd.f32 %v614, %v649
      %v654 = vadd.f32 %v615, %v649
      %v655 = vadd.f32 %v616, %v649
      %v656 = vadd.f32 %v617, %v649
      %v657 = vadd.f32 %v618, %v649
      %v658 = vadd.f32 %v619, %v649
      %v659 = vadd.f32 %v620, %v649
      %v660 = vadd.f32 %v621, %v649
      %v661 = vadd.f32 %v622, %v649
      %v662 = vadd.f32 %v623, %v649
      %v663 = vadd.f32 %v624, %v649
      %v664 = vadd.f32 %v625, %v649
      %v665 = vadd.f32 %v626, %v649
      %v666 = vadd.f32 %v627, %v649
      %v667 = vadd.f32 %v628, %v649
      %v668 = vadd.f32 %v629, %v649
      %v669 = vadd.f32 %v630, %v649
      %v670 = vadd.f32 %v631, %v649
      %v671 = vadd.f32 %v632, %v649
      %v672 = vadd.f32 %v633, %v649
      %v673 = vadd.f32 %v634, %v649
      %v674 = vadd.f32 %v635, %v649
      %v675 = vadd.f32 %v636, %v649
      %v676 = vadd.f32 %v637, %v649
      %v677 = vadd.f32 %v638, %v649
      %v678 = vadd.f32 %v639, %v649
      %v679 = vadd.f32 %v640, %v649
      %v680 = vadd.f32 %v641, %v649
      %v681 = vadd.f32 %v642, %v649
      %v682 = vadd.f32 %v643, %v649
      %v683 = vmax.f32 %v651, 0.0
      %v684 = vmax.f32 %v652, 0.0
      %v685 = vmax.f32 %v653, 0.0
      %v686 = vmax.f32 %v654, 0.0
      %v687 = vmax.f32 %v655, 0.0
      %v688 = vmax.f32 %v656, 0.0
      %v689 = vmax.f32 %v657, 0.0
      %v690 = vmax.f32 %v658, 0.0
      %v691 = vmax.f32 %v659, 0.0
      %v692 = vmax.f32 %v660, 0.0
      %v693 = vmax.f32 %v661, 0.0
      %v694 = vmax.f32 %v662, 0.0
      %v695 = vmax.f32 %v663, 0.0
      %v696 = vmax.f32 %v664, 0.0
      %v697 = vmax.f32 %v665, 0.0
      %v698 = vmax.f32 %v666, 0.0
      %v699 = vmax.f32 %v667, 0.0
      %v700 = vmax.f32 %v668, 0.0
      %v701 = vmax.f32 %v669, 0.0
      %v702 = vmax.f32 %v670, 0.0
      %v703 = vmax.f32 %v671, 0.0
      %v704 = vmax.f32 %v672, 0.0
      %v705 = vmax.f32 %v673, 0.0
      %v706 = vmax.f32 %v674, 0.0
      %v707 = vmax.f32 %v675, 0.0
      %v708 = vmax.f32 %v676, 0.0
      %v709 = vmax.f32 %v677, 0.0
      %v710 = vmax.f32 %v678, 0.0
      %v711 = vmax.f32 %v679, 0.0
      %v712 = vmax.f32 %v680, 0.0
      %v713 = vmax.f32 %v681, 0.0
      %v714 = vmax.f32 %v682, 0.0
      %v715 = vmin.f32 %v683, 6.0
      %v716 = vmin.f32 %v684, 6.0
      %v717 = vmin.f32 %v685, 6.0
      %v718 = vmin.f32 %v686, 6.0
      %v719 = vmin.f32 %v687, 6.0
      %v720 = vmin.f32 %v688, 6.0
      %v721 = vmin.f32 %v689, 6.0
      %v722 = vmin.f32 %v690, 6.0
      %v723 = vmin.f32 %v691, 6.0
      %v724 = vmin.f32 %v692, 6.0
      %v725 = vmin.f32 %v693, 6.0
      %v726 = vmin.f32 %v694, 6.0
      %v727 = vmin.f32 %v695, 6.0
      %v728 = vmin.f32 %v696, 6.0
      %v729 = vmin.f32 %v697, 6.0
      %v730 = vmin.f32 %v698, 6.0
      %v731 = vmin.f32 %v699, 6.0
      %v732 = vmin.f32 %v700, 6.0
      %v733 = vmin.f32 %v701, 6.0
      %v734 = vmin.f32 %v702, 6.0
      %v735 = vmin.f32 %v703, 6.0
      %v736 = vmin.f32 %v704, 6.0
      %v737 = vmin.f32 %v705, 6.0
      %v738 = vmin.f32 %v706, 6.0
      %v739 = vmin.f32 %v707, 6.0
      %v740 = vmin.f32 %v708, 6.0
      %v741 = vmin.f32 %v709, 6.0
      %v742 = vmin.f32 %v710, 6.0
      %v743 = vmin.f32 %v711, 6.0
      %v744 = vmin.f32 %v712, 6.0
      %v745 = vmin.f32 %v713, 6.0
      %v746 = vmin.f32 %v714, 6.0
      %v747 = vpack.c.bf16 %v716, %v715
      %v748 = vpack.c.bf16 %v718, %v717
      %v749 = vpack.c.bf16 %v720, %v719
      %v750 = vpack.c.bf16 %v722, %v721
      %v751 = vpack.c.bf16 %v724, %v723
      %v752 = vpack.c.bf16 %v726, %v725
      %v753 = vpack.c.bf16 %v728, %v727
      %v754 = vpack.c.bf16 %v730, %v729
      %v755 = vpack.c.bf16 %v732, %v731
      %v756 = vpack.c.bf16 %v734, %v733
      %v757 = vpack.c.bf16 %v736, %v735
      %v758 = vpack.c.bf16 %v738, %v737
      %v759 = vpack.c.bf16 %v740, %v739
      %v760 = vpack.c.bf16 %v742, %v741
      %v761 = vpack.c.bf16 %v744, %v743
      %v762 = vpack.c.bf16 %v746, %v745
      %v779 = vunpack.c.l.b16 %v747
      %v780 = vunpack.c.h.b16 %v747
      %v781 = vunpack.c.l.b16 %v748
      %v782 = vunpack.c.h.b16 %v748
      %v783 = vunpack.c.l.b16 %v749
      %v784 = vunpack.c.h.b16 %v749
      %v785 = vunpack.c.l.b16 %v750
      %v786 = vunpack.c.h.b16 %v750
      %v787 = vunpack.c.l.b16 %v751
      %v788 = vunpack.c.h.b16 %v751
      %v789 = vunpack.c.l.b16 %v752
      %v790 = vunpack.c.h.b16 %v752
      %v791 = vunpack.c.l.b16 %v753
      %v792 = vunpack.c.h.b16 %v753
      %v793 = vunpack.c.l.b16 %v754
      %v794 = vunpack.c.h.b16 %v754
      %v795 = vunpack.c.l.b16 %v755
      %v796 = vunpack.c.h.b16 %v755
      %v797 = vunpack.c.l.b16 %v756
      %v798 = vunpack.c.h.b16 %v756
      %v799 = vunpack.c.l.b16 %v757
      %v800 = vunpack.c.h.b16 %v757
      %v801 = vunpack.c.l.b16 %v758
      %v802 = vunpack.c.h.b16 %v758
      %v803 = vunpack.c.l.b16 %v759
      %v804 = vunpack.c.h.b16 %v759
      %v805 = vunpack.c.l.b16 %v760
      %v806 = vunpack.c.h.b16 %v760
      %v807 = vunpack.c.l.b16 %v761
      %v808 = vunpack.c.h.b16 %v761
      %v809 = vunpack.c.l.b16 %v762
      %v810 = vunpack.c.h.b16 %v762
      %v811 = vpack.c.b16 %v779, %v779
      %v812 = vpack.c.b16 %v780, %v780
      %v813 = vpack.c.b16 %v781, %v781
      %v814 = vpack.c.b16 %v782, %v782
      %v815 = vpack.c.b16 %v783, %v783
      %v816 = vpack.c.b16 %v784, %v784
      %v817 = vpack.c.b16 %v785, %v785
      %v818 = vpack.c.b16 %v786, %v786
      %v819 = vpack.c.b16 %v787, %v787
      %v820 = vpack.c.b16 %v788, %v788
      %v821 = vpack.c.b16 %v789, %v789
      %v822 = vpack.c.b16 %v790, %v790
      %v823 = vpack.c.b16 %v791, %v791
      %v824 = vpack.c.b16 %v792, %v792
      %v825 = vpack.c.b16 %v793, %v793
      %v826 = vpack.c.b16 %v794, %v794
      %v827 = vpack.c.b16 %v795, %v795
      %v828 = vpack.c.b16 %v796, %v796
      %v829 = vpack.c.b16 %v797, %v797
      %v830 = vpack.c.b16 %v798, %v798
      %v831 = vpack.c.b16 %v799, %v799
      %v832 = vpack.c.b16 %v800, %v800
      %v833 = vpack.c.b16 %v801, %v801
      %v834 = vpack.c.b16 %v802, %v802
      %v835 = vpack.c.b16 %v803, %v803
      %v836 = vpack.c.b16 %v804, %v804
      %v837 = vpack.c.b16 %v805, %v805
      %v838 = vpack.c.b16 %v806, %v806
      %v839 = vpack.c.b16 %v807, %v807
      %v840 = vpack.c.b16 %v808, %v808
      %v841 = vpack.c.b16 %v809, %v809
      %v842 = vpack.c.b16 %v810, %v810
      %vm875 = vcmask 257024
      %876 = vst.msk [vmem:[%s264] sm:$0xf] %vm875, %v811
      %877 = vst.msk [vmem:[%s264 + $0x4] sm:$0xf] %vm875, %v812
      %878 = vst.msk [vmem:[%s264 + $0x8] sm:$0xf] %vm875, %v813
      %879 = vst.msk [vmem:[%s264 + $0xc] sm:$0xf] %vm875, %v814
      %880 = vst.msk [vmem:[%s264 + $0x10] sm:$0xf] %vm875, %v815
      %881 = vst.msk [vmem:[%s264 + $0x14] sm:$0xf] %vm875, %v816
      %882 = vst.msk [vmem:[%s264 + $0x18] sm:$0xf] %vm875, %v817
      %883 = vst.msk [vmem:[%s264 + $0x1c] sm:$0xf] %vm875, %v818
      %884 = vst.msk [vmem:[%s264 + $0x20] sm:$0xf] %vm875, %v819
      %885 = vst.msk [vmem:[%s264 + $0x24] sm:$0xf] %vm875, %v820
      %886 = vst.msk [vmem:[%s264 + $0x28] sm:$0xf] %vm875, %v821
      %887 = vst.msk [vmem:[%s264 + $0x2c] sm:$0xf] %vm875, %v822
      %888 = vst.msk [vmem:[%s264 + $0x30] sm:$0xf] %vm875, %v823
      %889 = vst.msk [vmem:[%s264 + $0x34] sm:$0xf] %vm875, %v824
      %890 = vst.msk [vmem:[%s264 + $0x38] sm:$0xf] %vm875, %v825
      %891 = vst.msk [vmem:[%s264 + $0x3c] sm:$0xf] %vm875, %v826
      %892 = vst.msk [vmem:[%s264 + $0x40] sm:$0xf] %vm875, %v827
      %893 = vst.msk [vmem:[%s264 + $0x44] sm:$0xf] %vm875, %v828
      %894 = vst.msk [vmem:[%s264 + $0x48] sm:$0xf] %vm875, %v829
      %895 = vst.msk [vmem:[%s264 + $0x4c] sm:$0xf] %vm875, %v830
      %896 = vst.msk [vmem:[%s264 + $0x50] sm:$0xf] %vm875, %v831
      %897 = vst.msk [vmem:[%s264 + $0x54] sm:$0xf] %vm875, %v832
      %898 = vst.msk [vmem:[%s264 + $0x58] sm:$0xf] %vm875, %v833
      %899 = vst.msk [vmem:[%s264 + $0x5c] sm:$0xf] %vm875, %v834
      %900 = vst.msk [vmem:[%s264 + $0x60] sm:$0xf] %vm875, %v835
      %901 = vst.msk [vmem:[%s264 + $0x64] sm:$0xf] %vm875, %v836
      %902 = vst.msk [vmem:[%s264 + $0x68] sm:$0xf] %vm875, %v837
      %903 = vst.msk [vmem:[%s264 + $0x6c] sm:$0xf] %vm875, %v838
      %904 = vst.msk [vmem:[%s264 + $0x70] sm:$0xf] %vm875, %v839
      %905 = vst.msk [vmem:[%s264 + $0x74] sm:$0xf] %vm875, %v840
      %906 = vst.msk [vmem:[%s264 + $0x78] sm:$0xf] %vm875, %v841
      %907 = vst.msk [vmem:[%s264 + $0x7c] sm:$0xf] %vm875, %v842
      %s908 = smul.u32 32, %s19
      %p909 = scmp.lt.s32.totalorder %s908, 63
      %s910 = scalar_select %p909, %s908, 63
      %p911 = scmp.lt.s32.totalorder %s20, 0
      %s912 = scalar_select %p911, %s20, 0
      %s913 = sadd.s32 %s912, %s910
      %s914 = smul.addr %s913, 4
      %s915 = scalar_lea.vmem %s4, %s914
      // Predicated region
      $region37: #{tpu_custom_call.1} parent=35 // pred_check
        %p916 = pneg %p151
      $region38: #{tpu_custom_call.1} parent=35 // pred_check_branch
        %918 = sbr.rel (%p916) target = $region40
      $region39: #{tpu_custom_call.1} parent=35 // pred_region
        %s919 = smul.u32 32, %s19
      $region40: #{tpu_custom_call.1} parent=35 // pred_fallthru
        _
    $region36: #{tpu_custom_call.1} parent=5 // pred_fallthru
      _
    %p920 = scmp.le.s32.totalorder 2, %s10
    // Predicated region
    $region41: #{tpu_custom_call.1} parent=5 // pred_check
      %p921 = pneg %p920
    $region42: #{tpu_custom_call.1} parent=5 // pred_check_branch
      %923 = sbr.rel (%p921) target = $region44
    $region43: #{tpu_custom_call.1} parent=5 // pred_region
      %s924 = ssub.s32 %s10, 2
      // Predicated region
      $region45: #{tpu_custom_call.1} parent=43 // pred_check
        %p925 = pneg %p157
      $region46: #{tpu_custom_call.1} parent=43 // pred_check_branch
        %927 = sbr.rel (%p925) target = $region48
      $region47: #{tpu_custom_call.1} parent=43 // pred_region
        %s928 = smul.u32 32, %s21
        %p929 = scmp.lt.s32.totalorder %s928, 63
        %s930 = scalar_select %p929, %s928, 63
        %p931 = scmp.lt.s32.totalorder %s22, 0
        %s932 = scalar_select %p931, %s22, 0
        %s933 = sadd.s32 %s932, %s930
        %s934 = smul.addr %s933, 4
        %s935 = scalar_lea.vmem %s4, %s934
      $region48: #{tpu_custom_call.1} parent=43 // pred_fallthru
        _
    $region44: #{tpu_custom_call.1} parent=5 // pred_fallthru
      _
  $region6: #{tpu_custom_call.1} parent=0 // loop_footer
    %s14 = sadd.s32 1, %s10
  $region7: #{tpu_custom_call.1} parent=0 // loop_footer_branch
    %9 = sbr.rel target = $region3
  $region8: #{tpu_custom_call.1} parent=0 // loop_exit
    _

</llo_original>
